<compile_context>
chip_gen: v7x
topology: tpu7x:2x2x1
jax: 0.10.0
libtpu: 0.0.40
codegen_flags: <defaults>
</compile_context>

<pallas_src>
import jax
import jax.numpy as jnp
from jax.experimental import pallas as pl
from jax.experimental.pallas import tpu as pltpu

HIDDEN = 256
LANE = 128
SUBLANE = 8


def _round_up(x, m):
    return (x + m - 1) // m * m


def _choose_tile_b(B):
    Bp = _round_up(B, SUBLANE)
    if Bp <= 128:
        # Tiny batches are launch/DMA-latency bound; one small tile is fine.
        return Bp
    # Split into (at least) two 128-aligned tiles so v7x's second TensorCore
    # gets work via the "parallel" batch axis; cap at 2048 rows so big
    # v6e/v5e training batches still run in few grid steps while live
    # activations stay a few MiB (well under scoped VMEM everywhere).
    return min(_round_up(pl.cdiv(Bp, 2), 128), 2048)


def _actor_kernel(ma_ref, x_ref, w1_ref, b1_ref, w2_ref, b2_ref, w3_ref, b3_ref,
                  out_ref):
    # x: (TB, S) f32; weights bf16 (MXU-native); accumulate f32; elementwise f32.
    x = x_ref[...].astype(jnp.bfloat16)
    a = jnp.dot(x, w1_ref[...], preferred_element_type=jnp.float32)       # (TB, 256)
    a = jnp.maximum(a + b1_ref[...], 0.0)
    a = jnp.dot(a.astype(jnp.bfloat16), w2_ref[...],
                preferred_element_type=jnp.float32)                       # (TB, 256)
    a = jnp.maximum(a + b2_ref[...], 0.0)
    a = jnp.dot(a.astype(jnp.bfloat16), w3_ref[...],
                preferred_element_type=jnp.float32)                       # (TB, A_pad)
    out_ref[...] = (ma_ref[0] * jnp.tanh(a + b3_ref[...])).astype(out_ref.dtype)


def prepare_actor_params(params):
    """One-time preprocessing of the Actor params (call once, reuse every step).

    Casts weights to bf16 for the MXU and zero-pads the layer-3 output dim to a
    multiple of 128 lanes.  Keeping this out of the jitted forward avoids
    re-reading/re-writing ~0.5 MB of HBM per call.
    """
    H = params["w1"].shape[1]
    A = params["w3"].shape[1]
    A_pad = _round_up(A, LANE)
    return {
        "w1": params["w1"].astype(jnp.bfloat16),                               # (S, H)
        "b1": params["b1"].astype(jnp.float32),                                # (1, H)
        "w2": params["w2"].astype(jnp.bfloat16),                               # (H, H)
        "b2": params["b2"].astype(jnp.float32),                                # (1, H)
        "w3": jnp.zeros((H, A_pad), jnp.bfloat16)
                 .at[:, :A].set(params["w3"].astype(jnp.bfloat16)),            # (H, A_pad)
        "b3": jnp.zeros((1, A_pad), jnp.float32)
                 .at[:, :A].set(params["b3"].astype(jnp.float32)),             # (1, A_pad)
    }


def actor_forward(state, prepped, max_action, *, action_dim):
    """state: (B, state_dim) f32; prepped: output of prepare_actor_params."""
    B, S = state.shape
    H = prepped["w2"].shape[0]
    A_pad = prepped["w3"].shape[1]

    tile_b = _choose_tile_b(B)
    B_pad = _round_up(B, tile_b)
    x = state.astype(jnp.float32)
    if B_pad != B:
        # Padded rows produce garbage (tanh of biases) but are sliced off below.
        x = jnp.pad(x, ((0, B_pad - B), (0, 0)))
    nb = B_pad // tile_b

    ma = jnp.asarray(max_action, jnp.float32).reshape((1,))

    out = pl.pallas_call(
        _actor_kernel,
        out_shape=jax.ShapeDtypeStruct((B_pad, A_pad), jnp.float32),
        grid=(nb,),
        in_specs=[
            pl.BlockSpec(memory_space=pltpu.MemorySpace.SMEM),   # max_action scalar
            pl.BlockSpec((tile_b, S), lambda i: (i, 0)),         # state tile
            pl.BlockSpec((S, H), lambda i: (0, 0)),              # w1  bf16 (resident)
            pl.BlockSpec((1, H), lambda i: (0, 0)),              # b1  f32
            pl.BlockSpec((H, H), lambda i: (0, 0)),              # w2  bf16
            pl.BlockSpec((1, H), lambda i: (0, 0)),              # b2  f32
            pl.BlockSpec((H, A_pad), lambda i: (0, 0)),          # w3  bf16 (lane-padded)
            pl.BlockSpec((1, A_pad), lambda i: (0, 0)),          # b3  f32 (lane-padded)
        ],
        out_specs=pl.BlockSpec((tile_b, A_pad), lambda i: (i, 0)),
        compiler_params=pltpu.CompilerParams(
            dimension_semantics=("parallel",)),
    )(ma, x, prepped["w1"], prepped["b1"], prepped["w2"], prepped["b2"],
      prepped["w3"], prepped["b3"])

    return out[:B, :action_dim]


def init_params(key, state_dim, action_dim):
    """Deterministic synthetic init matching nn.Linear shapes.

    PyTorch stores Linear weight as (out, in); we store the transpose (in, out)
    so the kernel computes x @ W. Biases stored as (1, out).
    """
    ks = jax.random.split(key, 6)

    def uinit(k, shape, fan_in):
        bound = 1.0 / jnp.sqrt(jnp.float32(fan_in))
        return jax.random.uniform(k, shape, jnp.float32, -bound, bound)

    return {
        "w1": uinit(ks[0], (state_dim, HIDDEN), state_dim),
        "b1": uinit(ks[1], (1, HIDDEN), state_dim),
        "w2": uinit(ks[2], (HIDDEN, HIDDEN), HIDDEN),
        "b2": uinit(ks[3], (1, HIDDEN), HIDDEN),
        "w3": uinit(ks[4], (HIDDEN, action_dim), HIDDEN),
        "b3": uinit(ks[5], (1, action_dim), HIDDEN),
    }


def actor_ref(state, params, max_action):
    """Pure-JAX reference mirroring the kernel's bf16 matmul / f32 elementwise math."""
    bf = jnp.bfloat16
    a = jnp.dot(state.astype(bf), params["w1"].astype(bf),
                preferred_element_type=jnp.float32)
    a = jnp.maximum(a + params["b1"], 0.0)
    a = jnp.dot(a.astype(bf), params["w2"].astype(bf),
                preferred_element_type=jnp.float32)
    a = jnp.maximum(a + params["b2"], 0.0)
    a = jnp.dot(a.astype(bf), params["w3"].astype(bf),
                preferred_element_type=jnp.float32)
    return max_action * jnp.tanh(a + params["b3"])


if __name__ == "__main__":
    key = jax.random.PRNGKey(0)
    k_state, k_params = jax.random.split(key)

    batch, state_dim, action_dim = 8, 17, 6
    max_action = 2.0

    state = jax.random.normal(k_state, (batch, state_dim), jnp.float32)
    params = init_params(k_params, state_dim, action_dim)

    # One-time weight preprocessing (outside the jitted hot path).
    prepped = jax.tree_util.tree_map(jax.block_until_ready,
                                     prepare_actor_params(params))

    # jit with max_action as a traced scalar; action_dim static (shape).
    fwd = jax.jit(actor_forward, static_argnames=("action_dim",))
    out = fwd(state, prepped, jnp.float32(max_action), action_dim=action_dim)
    out = jax.block_until_ready(out)

    ref = actor_ref(state, params, max_action)
    assert out.shape == (batch, action_dim)
    assert jnp.allclose(out, ref, atol=5e-3, rtol=5e-3), (
        float(jnp.max(jnp.abs(out - ref))))

    print("KERNEL_OK")
</pallas_src>

<mosaic_0001>
module attributes {stable_mosaic.version = 11 : i64} {
  func.func @_actor_kernel(%arg0: i32, %arg1: memref<1xf32, #tpu.memory_space<smem>>, %arg2: memref<8x17xf32, #tpu.memory_space<vmem>>, %arg3: memref<17x256xbf16, #tpu.memory_space<vmem>>, %arg4: memref<1x256xf32, #tpu.memory_space<vmem>>, %arg5: memref<256x256xbf16, #tpu.memory_space<vmem>>, %arg6: memref<1x256xf32, #tpu.memory_space<vmem>>, %arg7: memref<256x128xbf16, #tpu.memory_space<vmem>>, %arg8: memref<1x128xf32, #tpu.memory_space<vmem>>, %arg9: memref<8x128xf32, #tpu.memory_space<vmem>>) attributes {dimension_semantics = [#tpu.dimension_semantics<parallel>], iteration_bounds = array<i64: 1>, scalar_prefetch = 0 : i64, scratch_operands = 0 : i64, tpu.core_type = #tpu.core_type<tc>, window_params = [{transform_indices = @transform_0, window_bounds = array<i64: 1>}, {transform_indices = @transform_1, window_bounds = array<i64: 8, 17>}, {pipeline_mode = #tpu.pipeline_mode<synchronous>, transform_indices = @transform_2, window_bounds = array<i64: 17, 256>}, {pipeline_mode = #tpu.pipeline_mode<synchronous>, transform_indices = @transform_3, window_bounds = array<i64: 1, 256>}, {pipeline_mode = #tpu.pipeline_mode<synchronous>, transform_indices = @transform_4, window_bounds = array<i64: 256, 256>}, {pipeline_mode = #tpu.pipeline_mode<synchronous>, transform_indices = @transform_5, window_bounds = array<i64: 1, 256>}, {pipeline_mode = #tpu.pipeline_mode<synchronous>, transform_indices = @transform_6, window_bounds = array<i64: 256, 128>}, {pipeline_mode = #tpu.pipeline_mode<synchronous>, transform_indices = @transform_7, window_bounds = array<i64: 1, 128>}, {transform_indices = @transform_8, window_bounds = array<i64: 8, 128>}]} {
    %c0 = arith.constant 0 : index
    %c0_0 = arith.constant 0 : index
    %0 = vector.load %arg2[%c0, %c0_0] : memref<8x17xf32, #tpu.memory_space<vmem>>, vector<8x17xf32>
    %1 = arith.truncf %0 : vector<8x17xf32> to vector<8x17xbf16>
    %c0_1 = arith.constant 0 : index
    %c0_2 = arith.constant 0 : index
    %2 = vector.load %arg3[%c0_1, %c0_2] : memref<17x256xbf16, #tpu.memory_space<vmem>>, vector<17x256xbf16>
    %cst = arith.constant dense<0.000000e+00> : vector<8x256xf32>
    %3 = tpu.matmul %1, %2, %cst {dimension_numbers = #tpu.dot_dimension_numbers<[1], [0], [0], [1], [0, 0, 1, 1], [], []>} : vector<8x17xbf16>, vector<17x256xbf16>, vector<8x256xf32> -> vector<8x256xf32>
    %c0_3 = arith.constant 0 : index
    %c0_4 = arith.constant 0 : index
    %4 = vector.load %arg4[%c0_3, %c0_4] : memref<1x256xf32, #tpu.memory_space<vmem>>, vector<1x256xf32>
    %5 = vector.broadcast %4 : vector<1x256xf32> to vector<8x256xf32>
    %6 = arith.addf %3, %5 : vector<8x256xf32>
    %cst_5 = arith.constant 0.000000e+00 : f32
    %7 = vector.broadcast %cst_5 : f32 to vector<8x256xf32>
    %8 = arith.maximumf %6, %7 : vector<8x256xf32>
    %9 = arith.truncf %8 : vector<8x256xf32> to vector<8x256xbf16>
    %c0_6 = arith.constant 0 : index
    %c0_7 = arith.constant 0 : index
    %10 = vector.load %arg5[%c0_6, %c0_7] : memref<256x256xbf16, #tpu.memory_space<vmem>>, vector<256x256xbf16>
    %cst_8 = arith.constant dense<0.000000e+00> : vector<8x256xf32>
    %11 = tpu.matmul %9, %10, %cst_8 {dimension_numbers = #tpu.dot_dimension_numbers<[1], [0], [0], [1], [0, 0, 1, 1], [], []>} : vector<8x256xbf16>, vector<256x256xbf16>, vector<8x256xf32> -> vector<8x256xf32>
    %c0_9 = arith.constant 0 : index
    %c0_10 = arith.constant 0 : index
    %12 = vector.load %arg6[%c0_9, %c0_10] : memref<1x256xf32, #tpu.memory_space<vmem>>, vector<1x256xf32>
    %13 = vector.broadcast %12 : vector<1x256xf32> to vector<8x256xf32>
    %14 = arith.addf %11, %13 : vector<8x256xf32>
    %cst_11 = arith.constant 0.000000e+00 : f32
    %15 = vector.broadcast %cst_11 : f32 to vector<8x256xf32>
    %16 = arith.maximumf %14, %15 : vector<8x256xf32>
    %17 = arith.truncf %16 : vector<8x256xf32> to vector<8x256xbf16>
    %c0_12 = arith.constant 0 : index
    %c0_13 = arith.constant 0 : index
    %18 = vector.load %arg7[%c0_12, %c0_13] : memref<256x128xbf16, #tpu.memory_space<vmem>>, vector<256x128xbf16>
    %cst_14 = arith.constant dense<0.000000e+00> : vector<8x128xf32>
    %19 = tpu.matmul %17, %18, %cst_14 {dimension_numbers = #tpu.dot_dimension_numbers<[1], [0], [0], [1], [0, 0, 1, 1], [], []>} : vector<8x256xbf16>, vector<256x128xbf16>, vector<8x128xf32> -> vector<8x128xf32>
    %c0_15 = arith.constant 0 : index
    %20 = memref.load %arg1[%c0_15] : memref<1xf32, #tpu.memory_space<smem>>
    %c0_16 = arith.constant 0 : index
    %c0_17 = arith.constant 0 : index
    %21 = vector.load %arg8[%c0_16, %c0_17] : memref<1x128xf32, #tpu.memory_space<vmem>>, vector<1x128xf32>
    %22 = vector.broadcast %21 : vector<1x128xf32> to vector<8x128xf32>
    %23 = arith.addf %19, %22 : vector<8x128xf32>
    %24 = math.tanh %23 : vector<8x128xf32>
    %25 = vector.broadcast %20 : f32 to vector<8x128xf32>
    %26 = arith.mulf %25, %24 : vector<8x128xf32>
    %c0_18 = arith.constant 0 : index
    %c0_19 = arith.constant 0 : index
    %27 = vector.load %arg9[%c0_18, %c0_19] : memref<8x128xf32, #tpu.memory_space<vmem>>, vector<8x128xf32>
    tpu.vector_store %arg9[%c0_18, %c0_19], %26 {strides = array<i32>} : memref<8x128xf32, #tpu.memory_space<vmem>>, vector<8x128xf32>,
    return
  }
  func.func @transform_0(%arg0: i32) -> i32 {
    %c0_i32 = arith.constant 0 : i32
    %c0_i32_0 = arith.constant 0 : i32
    return %c0_i32 : i32
  }
  func.func @transform_1(%arg0: i32) -> (i32, i32) {
    %c0_i32 = arith.constant 0 : i32
    %c0_i32_0 = arith.constant 0 : i32
    return %arg0, %c0_i32 : i32, i32
  }
  func.func @transform_2(%arg0: i32) -> (i32, i32) {
    %c0_i32 = arith.constant 0 : i32
    %c0_i32_0 = arith.constant 0 : i32
    %c0_i32_1 = arith.constant 0 : i32
    return %c0_i32, %c0_i32_0 : i32, i32
  }
  func.func @transform_3(%arg0: i32) -> (i32, i32) {
    %c0_i32 = arith.constant 0 : i32
    %c0_i32_0 = arith.constant 0 : i32
    %c0_i32_1 = arith.constant 0 : i32
    return %c0_i32, %c0_i32_0 : i32, i32
  }
  func.func @transform_4(%arg0: i32) -> (i32, i32) {
    %c0_i32 = arith.constant 0 : i32
    %c0_i32_0 = arith.constant 0 : i32
    %c0_i32_1 = arith.constant 0 : i32
    return %c0_i32, %c0_i32_0 : i32, i32
  }
  func.func @transform_5(%arg0: i32) -> (i32, i32) {
    %c0_i32 = arith.constant 0 : i32
    %c0_i32_0 = arith.constant 0 : i32
    %c0_i32_1 = arith.constant 0 : i32
    return %c0_i32, %c0_i32_0 : i32, i32
  }
  func.func @transform_6(%arg0: i32) -> (i32, i32) {
    %c0_i32 = arith.constant 0 : i32
    %c0_i32_0 = arith.constant 0 : i32
    %c0_i32_1 = arith.constant 0 : i32
    return %c0_i32, %c0_i32_0 : i32, i32
  }
  func.func @transform_7(%arg0: i32) -> (i32, i32) {
    %c0_i32 = arith.constant 0 : i32
    %c0_i32_0 = arith.constant 0 : i32
    %c0_i32_1 = arith.constant 0 : i32
    return %c0_i32, %c0_i32_0 : i32, i32
  }
  func.func @transform_8(%arg0: i32) -> (i32, i32) {
    %c0_i32 = arith.constant 0 : i32
    %c0_i32_0 = arith.constant 0 : i32
    return %arg0, %c0_i32 : i32, i32
  }
}

</mosaic_0001>

<llo_original>
// kernel: actor_forward.1
$region0: #{actor_forward.1}
  #allocation0 [shape = 'u32[]', space=smem, size = 0x4, offset = 0x4, fixed_abs, tag = 'smem constant byte address 0x4 - core index']
  #allocation1 [shape = 'u32[144,128]{1,0:T(1,128)}', space=vmem, size = 0x12000, scoped, tag = 'internal scratch']
  #allocation2 [shape = 'f32[1]{0:T(128)S(6)}', space=smem, size = 0x200, scoped, tag = 'scoped memory for actor_forward.1']
  %s0 = inlined_call_operand.<no memory space> [shape: f32[1], index: 0, kind: input, shape index: {}]
  %s1 = inlined_call_operand.hbm [shape: f32[8,17], index: 1, kind: input, shape index: {}]
  %s2 = inlined_call_operand.hbm [shape: bf16[17,256], index: 2, kind: input, shape index: {}]
  %s3 = inlined_call_operand.vmem [shape: f32[1,256], index: 3, kind: input, shape index: {}]
  %s4 = inlined_call_operand.hbm [shape: bf16[256,256], index: 4, kind: input, shape index: {}]
  %s5 = inlined_call_operand.vmem [shape: f32[1,256], index: 5, kind: input, shape index: {}]
  %s6 = inlined_call_operand.hbm [shape: bf16[256,128], index: 6, kind: input, shape index: {}]
  %s7 = inlined_call_operand.vmem [shape: f32[1,128], index: 7, kind: input, shape index: {}]
  %s8 = inlined_call_operand.hbm [shape: f32[8,128], index: 8, kind: output, shape index: {}]
  %s9 = sld [smem:[#allocation0]]
  $region58: #{actor_forward.1} parent=0
    _
  %s11 = ssub.s32 1, %s9
  %s12 = scalar_select 0, %s11, %s9
  %13 = sst [smem:[#allocation2]] %s0
  $region1: #{actor_forward.1} parent=0
    #allocation3 [shape = 'u8[4096]{0}', space=vmem, size = 0x1000, scoped, tag = 'input window, operand 1, single buffered']
    #allocation4 [shape = 's32[1]{0}', space=sflag, size = 0x4, scoped, tag = 'scoped memory for actor_forward.1']
    #allocation5 [shape = 's32[1]{0}', space=sflag, size = 0x4, scoped, tag = 'scoped memory for actor_forward.1']
    #allocation6 [shape = 'u8[12288]{0}', space=vmem, size = 0x3000, scoped, tag = 'input window, operand 2, single buffered']
    #allocation7 [shape = 's32[1]{0}', space=sflag, size = 0x4, scoped, tag = 'scoped memory for actor_forward.1']
    #allocation8 [shape = 'u8[131072]{0}', space=vmem, size = 0x20000, scoped, tag = 'input window, operand 4, single buffered']
    #allocation9 [shape = 'u8[65536]{0}', space=vmem, size = 0x10000, scoped, tag = 'input window, operand 6, single buffered']
    #allocation10 [shape = 's32[1]{0}', space=sflag, size = 0x4, scoped, tag = 'scoped memory for actor_forward.1']
    #allocation11 [shape = 'u8[4096]{0}', space=vmem, size = 0x1000, scoped, tag = 'output window, operand 0, single buffered']
    %14 = vsyncpa [#allocation4], 0
    %15 = vsyncpa [#allocation7], 0
    %16 = vsyncpa [#allocation10], 0
    %17 = vsyncpa [#allocation5], 0
    // Predicated region
    $region2: #{actor_forward.1} parent=1 // pred_check
      _
    $region3: #{actor_forward.1} parent=1 // pred_check_branch
      %19 = sbr.rel (0) target = $region5
    $region4: #{actor_forward.1} parent=1 // pred_region
      _
    $region5: #{actor_forward.1} parent=1 // pred_fallthru
      _
    // Predicated region
    $region6: #{actor_forward.1} parent=1 // pred_check
      _
    $region7: #{actor_forward.1} parent=1 // pred_check_branch
      %21 = sbr.rel (0) target = $region9
    $region8: #{actor_forward.1} parent=1 // pred_region
      %s23 = ssub.s32 128, 128
      %24 = vsyncadd [#allocation4], %s23
      %s26 = sshll.u32 [#allocation3], 4
      %s27 = int_to_ptr.vmem [resolvable:$true] %s26
      %29 = dma.hbm_to_vmem [thread:$0]  %s1, 128, %s27, [#allocation4]
    $region9: #{actor_forward.1} parent=1 // pred_fallthru
      _
    // Predicated region
    $region10: #{actor_forward.1} parent=1 // pred_check
      _
    $region11: #{actor_forward.1} parent=1 // pred_check_branch
      %31 = sbr.rel (0) target = $region13
    $region12: #{actor_forward.1} parent=1 // pred_region
      %s33 = ssub.s32 384, 384
      %34 = vsyncadd [#allocation7], %s33
      %s35 = sshll.u32 [#allocation6], 4
      %s36 = int_to_ptr.vmem [resolvable:$true] %s35
      %41 = dma.hbm_to_vmem [thread:$0]  %s2, 384, %s36, [#allocation7], 128, 128, 8
    $region13: #{actor_forward.1} parent=1 // pred_fallthru
      _
    // Predicated region
    $region14: #{actor_forward.1} parent=1 // pred_check
      _
    $region15: #{actor_forward.1} parent=1 // pred_check_branch
      %43 = sbr.rel (0) target = $region17
    $region16: #{actor_forward.1} parent=1 // pred_region
      _
    $region17: #{actor_forward.1} parent=1 // pred_fallthru
      _
    // Predicated region
    $region18: #{actor_forward.1} parent=1 // pred_check
      _
    $region19: #{actor_forward.1} parent=1 // pred_check_branch
      %45 = sbr.rel (0) target = $region21
    $region20: #{actor_forward.1} parent=1 // pred_region
      %s47 = ssub.s32 4096, 4096
      %48 = vsyncadd [#allocation7], %s47
      %s49 = sshll.u32 [#allocation8], 4
      %s50 = int_to_ptr.vmem [resolvable:$true] %s49
      %55 = dma.hbm_to_vmem [thread:$0]  %s4, 4096, %s50, [#allocation7], 128, 128, 8
    $region21: #{actor_forward.1} parent=1 // pred_fallthru
      _
    // Predicated region
    $region22: #{actor_forward.1} parent=1 // pred_check
      _
    $region23: #{actor_forward.1} parent=1 // pred_check_branch
      %57 = sbr.rel (0) target = $region25
    $region24: #{actor_forward.1} parent=1 // pred_region
      _
    $region25: #{actor_forward.1} parent=1 // pred_fallthru
      _
    // Predicated region
    $region26: #{actor_forward.1} parent=1 // pred_check
      _
    $region27: #{actor_forward.1} parent=1 // pred_check_branch
      %59 = sbr.rel (0) target = $region29
    $region28: #{actor_forward.1} parent=1 // pred_region
      %s61 = ssub.s32 2048, 2048
      %62 = vsyncadd [#allocation10], %s61
      %s63 = sshll.u32 [#allocation9], 4
      %s64 = int_to_ptr.vmem [resolvable:$true] %s63
      %69 = dma.hbm_to_vmem [thread:$0]  %s6, 2048, %s64, [#allocation10], 64, 64, 4
    $region29: #{actor_forward.1} parent=1 // pred_fallthru
      _
    // Predicated region
    $region30: #{actor_forward.1} parent=1 // pred_check
      _
    $region31: #{actor_forward.1} parent=1 // pred_check_branch
      %71 = sbr.rel (0) target = $region33
    $region32: #{actor_forward.1} parent=1 // pred_region
      _
    $region33: #{actor_forward.1} parent=1 // pred_fallthru
      _
    // Predicated region
    $region34: #{actor_forward.1} parent=1 // pred_check
      _
    $region35: #{actor_forward.1} parent=1 // pred_check_branch
      %73 = sbr.rel (0) target = $region37
    $region36: #{actor_forward.1} parent=1 // pred_region
      %74 = dma.done [#allocation4], 128
    $region37: #{actor_forward.1} parent=1 // pred_fallthru
      _
    // Predicated region
    $region38: #{actor_forward.1} parent=1 // pred_check
      _
    $region39: #{actor_forward.1} parent=1 // pred_check_branch
      %76 = sbr.rel (0) target = $region41
    $region40: #{actor_forward.1} parent=1 // pred_region
      %77 = dma.done [#allocation7], 384
    $region41: #{actor_forward.1} parent=1 // pred_fallthru
      _
    // Predicated region
    $region42: #{actor_forward.1} parent=1 // pred_check
      _
    $region43: #{actor_forward.1} parent=1 // pred_check_branch
      %79 = sbr.rel (0) target = $region45
    $region44: #{actor_forward.1} parent=1 // pred_region
      %80 = dma.done [#allocation7], 4096
    $region45: #{actor_forward.1} parent=1 // pred_fallthru
      _
    // Predicated region
    $region46: #{actor_forward.1} parent=1 // pred_check
      _
    $region47: #{actor_forward.1} parent=1 // pred_check_branch
      %82 = sbr.rel (0) target = $region49
    $region48: #{actor_forward.1} parent=1 // pred_region
      %83 = dma.done [#allocation10], 2048
    $region49: #{actor_forward.1} parent=1 // pred_fallthru
      _
    %v85 = vld [vmem:[#allocation3] sm:$0xff]
    %v86 = vpack.c.bf16 %v85, %v85
    %v87 = vld [vmem:[#allocation6] sm:$0xff]
    %v88 = vld [vmem:[#allocation6 + $0x8] sm:$0xff]
    %v89 = vld [vmem:[#allocation6 + $0x10] sm:$0x11]
    %v90 = vld [vmem:[%s3] sm:$0x3]
    %v92 = vlaneseq
    %v93 = vshrl.u32 %v92, 7
    %v94 = vsub.s32 0, %v93
    %v95 = vrot.slane %v90, %v94
    %v96 = vlaneseq
    %v97 = vshrl.u32 %v96, 7
    %v98 = vsub.s32 1, %v97
    %v99 = vrot.slane %v90, %v98
    %v105 = vunpack.c.l.b16 %v87
    %v106 = vunpack.c.h.b16 %v87
    %v107 = vunpack.c.l.b16 %v88
    %v108 = vunpack.c.h.b16 %v88
    %v109 = vunpack.c.l.b16 %v89
    %v110 = vunpack.c.h.b16 %v89
    %v111 = vpack.c.b16 %v107, %v105
    %v112 = vpack.c.b16 %v108, %v106
    %v113 = vpack.c.b16 %v109, %v109
    %v114 = vpack.c.b16 %v110, %v110
    %vm117 = vcmask 138240
    %v119 = vsel %vm117, %v86, 0
    %vm121 = vcmask 1040384
    %v122 = vsel 0, 4294967295, 65535
    %v123 = vsel %vm121, %v122, 0
    %v125 = vand.u32 %v113, %v123
    %v128 = vand.u32 %v114, %v123
    %130 = vmatprep.subr.bf16.mxu0 %v112
    %131 = vmatpush1.bf16.msra.mxu0 %v111
    %132 = vmatprep.subr.bf16.mxu0 %v128
    %133 = vmatpush1.bf16.msra.mxu0 %v125
    %134 = vmatprep.subr.bf16.mxu0 0
    %135 = vmatpush1.bf16.msra.mxu0 0
    %136 = vmatprep.subr.bf16.mxu0 0
    %137 = vmatpush1.bf16.msra.mxu0 0
    %138 = vmatprep.subr.bf16.mxu0 0
    %139 = vmatpush1.bf16.msra.mxu0 0
    %140 = vmatprep.subr.bf16.mxu0 0
    %141 = vmatpush1.bf16.msra.mxu0 0
    %142 = vmatprep.subr.bf16.mxu0 0
    %143 = vmatpush1.bf16.msra.mxu0 0
    %144 = vmatprep.subr.bf16.mxu0 0
    %145 = vmatpush1.bf16.msra.mxu0 0
    %146 = vmatprep.subr.bf16.mxu0 0
    %147 = vmatpush1.bf16.msra.mxu0 0
    %148 = vmatprep.subr.bf16.mxu0 0
    %149 = vmatpush1.bf16.msra.mxu0 0
    %150 = vmatprep.subr.bf16.mxu0 0
    %151 = vmatpush1.bf16.msra.mxu0 0
    %152 = vmatprep.subr.bf16.mxu0 0
    %153 = vmatpush1.bf16.msra.mxu0 0
    %154 = vmatprep.subr.bf16.mxu0 0
    %155 = vmatpush1.bf16.msra.mxu0 0
    %156 = vmatprep.subr.bf16.mxu0 0
    %157 = vmatpush1.bf16.msra.mxu0 0
    %158 = vmatprep.subr.bf16.mxu0 0
    %159 = vmatpush1.bf16.msra.mxu0 0
    %160 = vmatprep.subr.bf16.mxu0 0
    %161 = vmatpush1.bf16.msra.mxu0 0
    %162 = vmatprep.mubr.bf16.mxu0 0
    %163 = vmatmul.mubr.bf16.gmra.mrb[0].mxu0 %v119
    %v164 = vpop.f32.mrb[0].mxu0
    %v165 = vadd.f32 %v95, %v164
    %v166 = vpop.f32.mrb[0].mxu0
    %v167 = vadd.f32 %v99, %v166
    %v168 = vpop.f32.mrb[0].mxu0
    %v169 = vpop.f32.mrb[0].mxu0
    %170 = vdwg.mxu0
    %v171 = vmax.f32 %v165, 0.0
    %v172 = vmax.f32 %v167, 0.0
    %v173 = vpack.c.bf16 %v171, %v171
    %v174 = vpack.c.bf16 %v172, %v172
    %v175 = vld [vmem:[#allocation8] sm:$0xff]
    %v176 = vld [vmem:[#allocation8 + $0x8] sm:$0xff]
    %v177 = vld [vmem:[#allocation8 + $0x10] sm:$0xff]
    %v178 = vld [vmem:[#allocation8 + $0x18] sm:$0xff]
    %v179 = vld [vmem:[#allocation8 + $0x20] sm:$0xff]
    %v180 = vld [vmem:[#allocation8 + $0x28] sm:$0xff]
    %v181 = vld [vmem:[#allocation8 + $0x30] sm:$0xff]
    %v182 = vld [vmem:[#allocation8 + $0x38] sm:$0xff]
    %v183 = vld [vmem:[#allocation8 + $0x40] sm:$0xff]
    %v184 = vld [vmem:[#allocation8 + $0x48] sm:$0xff]
    %v185 = vld [vmem:[#allocation8 + $0x50] sm:$0xff]
    %v186 = vld [vmem:[#allocation8 + $0x58] sm:$0xff]
    %v187 = vld [vmem:[#allocation8 + $0x60] sm:$0xff]
    %v188 = vld [vmem:[#allocation8 + $0x68] sm:$0xff]
    %v189 = vld [vmem:[#allocation8 + $0x70] sm:$0xff]
    %v190 = vld [vmem:[#allocation8 + $0x78] sm:$0xff]
    %v191 = vld [vmem:[#allocation8 + $0x80] sm:$0xff]
    %v192 = vld [vmem:[#allocation8 + $0x88] sm:$0xff]
    %v193 = vld [vmem:[#allocation8 + $0x90] sm:$0xff]
    %v194 = vld [vmem:[#allocation8 + $0x98] sm:$0xff]
    %v195 = vld [vmem:[#allocation8 + $0xa0] sm:$0xff]
    %v196 = vld [vmem:[#allocation8 + $0xa8] sm:$0xff]
    %v197 = vld [vmem:[#allocation8 + $0xb0] sm:$0xff]
    %v198 = vld [vmem:[#allocation8 + $0xb8] sm:$0xff]
    %v199 = vld [vmem:[#allocation8 + $0xc0] sm:$0xff]
    %v200 = vld [vmem:[#allocation8 + $0xc8] sm:$0xff]
    %v201 = vld [vmem:[#allocation8 + $0xd0] sm:$0xff]
    %v202 = vld [vmem:[#allocation8 + $0xd8] sm:$0xff]
    %v203 = vld [vmem:[#allocation8 + $0xe0] sm:$0xff]
    %v204 = vld [vmem:[#allocation8 + $0xe8] sm:$0xff]
    %v205 = vld [vmem:[#allocation8 + $0xf0] sm:$0xff]
    %v206 = vld [vmem:[#allocation8 + $0xf8] sm:$0xff]
    %v207 = vld [vmem:[%s5] sm:$0x3]
    %v209 = vlaneseq
    %v210 = vshrl.u32 %v209, 7
    %v211 = vsub.s32 0, %v210
    %v212 = vrot.slane %v207, %v211
    %v213 = vlaneseq
    %v214 = vshrl.u32 %v213, 7
    %v215 = vsub.s32 1, %v214
    %v216 = vrot.slane %v207, %v215
    %v251 = vunpack.c.l.b16 %v175
    %v252 = vunpack.c.h.b16 %v175
    %v253 = vunpack.c.l.b16 %v176
    %v254 = vunpack.c.h.b16 %v176
    %v255 = vunpack.c.l.b16 %v177
    %v256 = vunpack.c.h.b16 %v177
    %v257 = vunpack.c.l.b16 %v178
    %v258 = vunpack.c.h.b16 %v178
    %v259 = vunpack.c.l.b16 %v179
    %v260 = vunpack.c.h.b16 %v179
    %v261 = vunpack.c.l.b16 %v180
    %v262 = vunpack.c.h.b16 %v180
    %v263 = vunpack.c.l.b16 %v181
    %v264 = vunpack.c.h.b16 %v181
    %v265 = vunpack.c.l.b16 %v182
    %v266 = vunpack.c.h.b16 %v182
    %v267 = vunpack.c.l.b16 %v183
    %v268 = vunpack.c.h.b16 %v183
    %v269 = vunpack.c.l.b16 %v184
    %v270 = vunpack.c.h.b16 %v184
    %v271 = vunpack.c.l.b16 %v185
    %v272 = vunpack.c.h.b16 %v185
    %v273 = vunpack.c.l.b16 %v186
    %v274 = vunpack.c.h.b16 %v186
    %v275 = vunpack.c.l.b16 %v187
    %v276 = vunpack.c.h.b16 %v187
    %v277 = vunpack.c.l.b16 %v188
    %v278 = vunpack.c.h.b16 %v188
    %v279 = vunpack.c.l.b16 %v189
    %v280 = vunpack.c.h.b16 %v189
    %v281 = vunpack.c.l.b16 %v190
    %v282 = vunpack.c.h.b16 %v190
    %v283 = vunpack.c.l.b16 %v191
    %v284 = vunpack.c.h.b16 %v191
    %v285 = vunpack.c.l.b16 %v192
    %v286 = vunpack.c.h.b16 %v192
    %v287 = vunpack.c.l.b16 %v193
    %v288 = vunpack.c.h.b16 %v193
    %v289 = vunpack.c.l.b16 %v194
    %v290 = vunpack.c.h.b16 %v194
    %v291 = vunpack.c.l.b16 %v195
    %v292 = vunpack.c.h.b16 %v195
    %v293 = vunpack.c.l.b16 %v196
    %v294 = vunpack.c.h.b16 %v196
    %v295 = vunpack.c.l.b16 %v197
    %v296 = vunpack.c.h.b16 %v197
    %v297 = vunpack.c.l.b16 %v198
    %v298 = vunpack.c.h.b16 %v198
    %v299 = vunpack.c.l.b16 %v199
    %v300 = vunpack.c.h.b16 %v199
    %v301 = vunpack.c.l.b16 %v200
    %v302 = vunpack.c.h.b16 %v200
    %v303 = vunpack.c.l.b16 %v201
    %v304 = vunpack.c.h.b16 %v201
    %v305 = vunpack.c.l.b16 %v202
    %v306 = vunpack.c.h.b16 %v202
    %v307 = vunpack.c.l.b16 %v203
    %v308 = vunpack.c.h.b16 %v203
    %v309 = vunpack.c.l.b16 %v204
    %v310 = vunpack.c.h.b16 %v204
    %v311 = vunpack.c.l.b16 %v205
    %v312 = vunpack.c.h.b16 %v205
    %v313 = vunpack.c.l.b16 %v206
    %v314 = vunpack.c.h.b16 %v206
    %v315 = vpack.c.b16 %v253, %v251
    %v316 = vpack.c.b16 %v254, %v252
    %v317 = vpack.c.b16 %v257, %v255
    %v318 = vpack.c.b16 %v258, %v256
    %v319 = vpack.c.b16 %v261, %v259
    %v320 = vpack.c.b16 %v262, %v260
    %v321 = vpack.c.b16 %v265, %v263
    %v322 = vpack.c.b16 %v266, %v264
    %v323 = vpack.c.b16 %v269, %v267
    %v324 = vpack.c.b16 %v270, %v268
    %v325 = vpack.c.b16 %v273, %v271
    %v326 = vpack.c.b16 %v274, %v272
    %v327 = vpack.c.b16 %v277, %v275
    %v328 = vpack.c.b16 %v278, %v276
    %v329 = vpack.c.b16 %v281, %v279
    %v330 = vpack.c.b16 %v282, %v280
    %v331 = vpack.c.b16 %v285, %v283
    %v332 = vpack.c.b16 %v286, %v284
    %v333 = vpack.c.b16 %v289, %v287
    %v334 = vpack.c.b16 %v290, %v288
    %v335 = vpack.c.b16 %v293, %v291
    %v336 = vpack.c.b16 %v294, %v292
    %v337 = vpack.c.b16 %v297, %v295
    %v338 = vpack.c.b16 %v298, %v296
    %v339 = vpack.c.b16 %v301, %v299
    %v340 = vpack.c.b16 %v302, %v300
    %v341 = vpack.c.b16 %v305, %v303
    %v342 = vpack.c.b16 %v306, %v304
    %v343 = vpack.c.b16 %v309, %v307
    %v344 = vpack.c.b16 %v310, %v308
    %v345 = vpack.c.b16 %v313, %v311
    %v346 = vpack.c.b16 %v314, %v312
    %379 = vmatprep.subr.bf16.mxu0 %v316
    %380 = vmatpush1.bf16.msra.mxu0 %v315
    %381 = vmatprep.subr.bf16.mxu0 %v318
    %382 = vmatpush1.bf16.msra.mxu0 %v317
    %383 = vmatprep.subr.bf16.mxu0 %v320
    %384 = vmatpush1.bf16.msra.mxu0 %v319
    %385 = vmatprep.subr.bf16.mxu0 %v322
    %386 = vmatpush1.bf16.msra.mxu0 %v321
    %387 = vmatprep.subr.bf16.mxu0 %v324
    %388 = vmatpush1.bf16.msra.mxu0 %v323
    %389 = vmatprep.subr.bf16.mxu0 %v326
    %390 = vmatpush1.bf16.msra.mxu0 %v325
    %391 = vmatprep.subr.bf16.mxu0 %v328
    %392 = vmatpush1.bf16.msra.mxu0 %v327
    %393 = vmatprep.subr.bf16.mxu0 %v330
    %394 = vmatpush1.bf16.msra.mxu0 %v329
    %395 = vmatprep.subr.bf16.mxu0 %v332
    %396 = vmatpush1.bf16.msra.mxu0 %v331
    %397 = vmatprep.subr.bf16.mxu0 %v334
    %398 = vmatpush1.bf16.msra.mxu0 %v333
    %399 = vmatprep.subr.bf16.mxu0 %v336
    %400 = vmatpush1.bf16.msra.mxu0 %v335
    %401 = vmatprep.subr.bf16.mxu0 %v338
    %402 = vmatpush1.bf16.msra.mxu0 %v337
    %403 = vmatprep.subr.bf16.mxu0 %v340
    %404 = vmatpush1.bf16.msra.mxu0 %v339
    %405 = vmatprep.subr.bf16.mxu0 %v342
    %406 = vmatpush1.bf16.msra.mxu0 %v341
    %407 = vmatprep.subr.bf16.mxu0 %v344
    %408 = vmatpush1.bf16.msra.mxu0 %v343
    %409 = vmatprep.subr.bf16.mxu0 %v346
    %410 = vmatpush1.bf16.msra.mxu0 %v345
    %411 = vmatprep.mubr.bf16.mxu0 %v174
    %412 = vmatmul.mubr.bf16.gmra.mrb[0].mxu0 %v173
    %v413 = vpop.f32.mrb[0].mxu0
    %v414 = vadd.f32 %v212, %v413
    %v415 = vpop.f32.mrb[0].mxu0
    %v416 = vadd.f32 %v216, %v415
    %v417 = vpop.f32.mrb[0].mxu0
    %v418 = vpop.f32.mrb[0].mxu0
    %419 = vdwg.mxu0
    %v420 = vmax.f32 %v414, 0.0
    %v421 = vmax.f32 %v416, 0.0
    %v422 = vpack.c.bf16 %v420, %v420
    %v423 = vpack.c.bf16 %v421, %v421
    %v424 = vld [vmem:[#allocation9] sm:$0xf]
    %v425 = vld [vmem:[#allocation9 + $0x4] sm:$0xf]
    %v426 = vld [vmem:[#allocation9 + $0x8] sm:$0xf]
    %v427 = vld [vmem:[#allocation9 + $0xc] sm:$0xf]
    %v428 = vld [vmem:[#allocation9 + $0x10] sm:$0xf]
    %v429 = vld [vmem:[#allocation9 + $0x14] sm:$0xf]
    %v430 = vld [vmem:[#allocation9 + $0x18] sm:$0xf]
    %v431 = vld [vmem:[#allocation9 + $0x1c] sm:$0xf]
    %v432 = vld [vmem:[#allocation9 + $0x20] sm:$0xf]
    %v433 = vld [vmem:[#allocation9 + $0x24] sm:$0xf]
    %v434 = vld [vmem:[#allocation9 + $0x28] sm:$0xf]
    %v435 = vld [vmem:[#allocation9 + $0x2c] sm:$0xf]
    %v436 = vld [vmem:[#allocation9 + $0x30] sm:$0xf]
    %v437 = vld [vmem:[#allocation9 + $0x34] sm:$0xf]
    %v438 = vld [vmem:[#allocation9 + $0x38] sm:$0xf]
    %v439 = vld [vmem:[#allocation9 + $0x3c] sm:$0xf]
    %v440 = vld [vmem:[#allocation9 + $0x40] sm:$0xf]
    %v441 = vld [vmem:[#allocation9 + $0x44] sm:$0xf]
    %v442 = vld [vmem:[#allocation9 + $0x48] sm:$0xf]
    %v443 = vld [vmem:[#allocation9 + $0x4c] sm:$0xf]
    %v444 = vld [vmem:[#allocation9 + $0x50] sm:$0xf]
    %v445 = vld [vmem:[#allocation9 + $0x54] sm:$0xf]
    %v446 = vld [vmem:[#allocation9 + $0x58] sm:$0xf]
    %v447 = vld [vmem:[#allocation9 + $0x5c] sm:$0xf]
    %v448 = vld [vmem:[#allocation9 + $0x60] sm:$0xf]
    %v449 = vld [vmem:[#allocation9 + $0x64] sm:$0xf]
    %v450 = vld [vmem:[#allocation9 + $0x68] sm:$0xf]
    %v451 = vld [vmem:[#allocation9 + $0x6c] sm:$0xf]
    %v452 = vld [vmem:[#allocation9 + $0x70] sm:$0xf]
    %v453 = vld [vmem:[#allocation9 + $0x74] sm:$0xf]
    %v454 = vld [vmem:[#allocation9 + $0x78] sm:$0xf]
    %v455 = vld [vmem:[#allocation9 + $0x7c] sm:$0xf]
    %s456 = sld [smem:[#allocation2]]
    %v457 = vld [vmem:[%s7] sm:$0x1]
    %v459 = vlaneseq
    %v460 = vshrl.u32 %v459, 7
    %v461 = vsub.s32 0, %v460
    %v462 = vrot.slane %v457, %v461
    %v496 = vunpack.c.l.b16 %v424
    %v497 = vunpack.c.l.b16 %v425
    %v498 = vunpack.c.l.b16 %v426
    %v499 = vunpack.c.l.b16 %v427
    %v500 = vunpack.c.l.b16 %v428
    %v501 = vunpack.c.l.b16 %v429
    %v502 = vunpack.c.l.b16 %v430
    %v503 = vunpack.c.l.b16 %v431
    %v504 = vunpack.c.l.b16 %v432
    %v505 = vunpack.c.l.b16 %v433
    %v506 = vunpack.c.l.b16 %v434
    %v507 = vunpack.c.l.b16 %v435
    %v508 = vunpack.c.l.b16 %v436
    %v509 = vunpack.c.l.b16 %v437
    %v510 = vunpack.c.l.b16 %v438
    %v511 = vunpack.c.l.b16 %v439
    %v512 = vunpack.c.l.b16 %v440
    %v513 = vunpack.c.l.b16 %v441
    %v514 = vunpack.c.l.b16 %v442
    %v515 = vunpack.c.l.b16 %v443
    %v516 = vunpack.c.l.b16 %v444
    %v517 = vunpack.c.l.b16 %v445
    %v518 = vunpack.c.l.b16 %v446
    %v519 = vunpack.c.l.b16 %v447
    %v520 = vunpack.c.l.b16 %v448
    %v521 = vunpack.c.l.b16 %v449
    %v522 = vunpack.c.l.b16 %v450
    %v523 = vunpack.c.l.b16 %v451
    %v524 = vunpack.c.l.b16 %v452
    %v525 = vunpack.c.l.b16 %v453
    %v526 = vunpack.c.l.b16 %v454
    %v527 = vunpack.c.l.b16 %v455
    %v528 = vpack.c.b16 %v497, %v496
    %v529 = vpack.c.b16 %v499, %v498
    %v530 = vpack.c.b16 %v501, %v500
    %v531 = vpack.c.b16 %v503, %v502
    %v532 = vpack.c.b16 %v505, %v504
    %v533 = vpack.c.b16 %v507, %v506
    %v534 = vpack.c.b16 %v509, %v508
    %v535 = vpack.c.b16 %v511, %v510
    %v536 = vpack.c.b16 %v513, %v512
    %v537 = vpack.c.b16 %v515, %v514
    %v538 = vpack.c.b16 %v517, %v516
    %v539 = vpack.c.b16 %v519, %v518
    %v540 = vpack.c.b16 %v521, %v520
    %v541 = vpack.c.b16 %v523, %v522
    %v542 = vpack.c.b16 %v525, %v524
    %v543 = vpack.c.b16 %v527, %v526
    %560 = vmatprep.subr.bf16.mxu0 0
    %561 = vmatpush1.bf16.msra.mxu0 %v528
    %562 = vmatprep.subr.bf16.mxu0 0
    %563 = vmatpush1.bf16.msra.mxu0 %v529
    %564 = vmatprep.subr.bf16.mxu0 0
    %565 = vmatpush1.bf16.msra.mxu0 %v530
    %566 = vmatprep.subr.bf16.mxu0 0
    %567 = vmatpush1.bf16.msra.mxu0 %v531
    %568 = vmatprep.subr.bf16.mxu0 0
    %569 = vmatpush1.bf16.msra.mxu0 %v532
    %570 = vmatprep.subr.bf16.mxu0 0
    %571 = vmatpush1.bf16.msra.mxu0 %v533
    %572 = vmatprep.subr.bf16.mxu0 0
    %573 = vmatpush1.bf16.msra.mxu0 %v534
    %574 = vmatprep.subr.bf16.mxu0 0
    %575 = vmatpush1.bf16.msra.mxu0 %v535
    %576 = vmatprep.subr.bf16.mxu0 0
    %577 = vmatpush1.bf16.msra.mxu0 %v536
    %578 = vmatprep.subr.bf16.mxu0 0
    %579 = vmatpush1.bf16.msra.mxu0 %v537
    %580 = vmatprep.subr.bf16.mxu0 0
    %581 = vmatpush1.bf16.msra.mxu0 %v538
    %582 = vmatprep.subr.bf16.mxu0 0
    %583 = vmatpush1.bf16.msra.mxu0 %v539
    %584 = vmatprep.subr.bf16.mxu0 0
    %585 = vmatpush1.bf16.msra.mxu0 %v540
    %586 = vmatprep.subr.bf16.mxu0 0
    %587 = vmatpush1.bf16.msra.mxu0 %v541
    %588 = vmatprep.subr.bf16.mxu0 0
    %589 = vmatpush1.bf16.msra.mxu0 %v542
    %590 = vmatprep.subr.bf16.mxu0 0
    %591 = vmatpush1.bf16.msra.mxu0 %v543
    %592 = vmatprep.mubr.bf16.mxu0 %v423
    %593 = vmatmul.mubr.bf16.gmra.mrb[0].mxu0 %v422
    %v594 = vpop.f32.mrb[0].mxu0
    %v595 = vadd.f32 %v462, %v594
    %v596 = vpop.f32.mrb[0].mxu0
    %v597 = vpop.f32.mrb[0].mxu0
    %v598 = vpop.f32.mrb[0].mxu0
    %599 = vdwg.mxu0
    %v600 = vtanh.pop %v595
    %v601 = vstv %s456
    %v602 = vmul.f32 %v601, %v600
    %603 = vst [vmem:[#allocation11] sm:$0xff] %v602
    // Predicated region
    $region50: #{actor_forward.1} parent=1 // pred_check
      _
    $region51: #{actor_forward.1} parent=1 // pred_check_branch
      %605 = sbr.rel (0) target = $region53
    $region52: #{actor_forward.1} parent=1 // pred_region
      %s607 = ssub.s32 128, 128
      %608 = vsyncadd [#allocation5], %s607
      %s610 = sshll.u32 [#allocation11], 4
      %s611 = int_to_ptr.vmem [resolvable:$true] %s610
      %613 = dma.vmem_to_hbm [thread:$0]  %s611, 128, %s8, [#allocation5]
    $region53: #{actor_forward.1} parent=1 // pred_fallthru
      _
    // Predicated region
    $region54: #{actor_forward.1} parent=1 // pred_check
      _
    $region55: #{actor_forward.1} parent=1 // pred_check_branch
      %615 = sbr.rel (0) target = $region57
    $region56: #{actor_forward.1} parent=1 // pred_region
      %616 = dma.done [#allocation5], 128
    $region57: #{actor_forward.1} parent=1 // pred_fallthru
      _
    %617 = vsyncpa [#allocation4], 1
    %618 = vsyncpa [#allocation7], 1
    %619 = vsyncpa [#allocation10], 1
    %620 = vsyncpa [#allocation5], 1

</llo_original>
